<compile_context>
chip_gen: v6e
topology: v6e:2x2x1
jax: 0.10.0
libtpu: 0.0.40
codegen_flags: <defaults>
</compile_context>

<pallas_src>
import numpy as np
import jax
import jax.numpy as jnp
from jax import lax
from jax.experimental import pallas as pl
from jax.experimental.pallas import tpu as pltpu


def _round_up(x, m):
    return ((x + m - 1) // m) * m


def _vmem_spec():
    return pl.BlockSpec(memory_space=pltpu.MemorySpace.VMEM)


def _vmem_capacity_bytes():
    """Per-TensorCore VMEM capacity; conservative (v7x-safe) fallback."""
    try:
        info = pltpu.get_tpu_info()
        cap = int(getattr(info, "vmem_capacity_bytes", 0) or 0)
        if cap > 0:
            return cap
    except Exception:
        pass
    return 64 * 1024 * 1024


# ----------------------------------------------------------------------------
# Kernel 1: per-tile neighbor scores + per-tile k-smallest selection.
#   score[b, n] = ||c_n||^2 - 2 t_b . c_n   (same ordering over n as ||t-c||)
# Inputs per grid step:
#   t   (B_pad, D)      bf16  resident query
#   c   (D, n_tile)     bf16  streamed, lane-dense transposed codebook tile
#   c2  (1, n_tile)     f32   precomputed ||c||^2 (1e30 on padded columns)
# Outputs per grid step (lane-dense 128-wide candidate blocks):
#   s_out (B_pad, KPAD) f32   k smallest scores of this tile, rest 3e38
#   i_out (B_pad, KPAD) int32 matching global codebook indices, rest 0
# ----------------------------------------------------------------------------
def _make_knn_topk_kernel(k, kpad, n_tile):
    def kernel(t_ref, c_ref, c2_ref, s_out_ref, i_out_ref):
        t = t_ref[...]                                           # (B, D)  bf16
        c = c_ref[...]                                           # (D, Nt) bf16
        cross = jnp.dot(t, c, preferred_element_type=jnp.float32)  # (B, Nt) f32
        scores = c2_ref[...] - 2.0 * cross                       # f32 VPU math

        bp = scores.shape[0]
        base = pl.program_id(0) * n_tile
        col = lax.broadcasted_iota(jnp.int32, scores.shape, 1)
        out_col = lax.broadcasted_iota(jnp.int32, (bp, kpad), 1)

        s_acc = jnp.full((bp, kpad), 3.0e38, dtype=jnp.float32)
        i_acc = jnp.zeros((bp, kpad), dtype=jnp.int32)
        work = scores
        for j in range(k):                       # k is small & static: unrolled
            m = jnp.min(work, axis=1, keepdims=True)                  # (B, 1)
            hit = jnp.where(work == m, col, jnp.int32(2147483647))
            idx = jnp.min(hit, axis=1, keepdims=True)                 # (B, 1)
            s_acc = jnp.where(out_col == j, m, s_acc)
            i_acc = jnp.where(out_col == j, idx + base, i_acc)
            work = jnp.where(col == idx, 3.0e38, work)
        s_out_ref[...] = s_acc
        i_out_ref[...] = i_acc
    return kernel


# ----------------------------------------------------------------------------
# Kernel 2: the prior MLP (encode) — 7 fused MXU matmuls, bf16 weight slabs,
# lane-padded hidden (H) and output (OUT) widths.  All tanh / bias math in f32.
# Weight slab columns: [h1 | s2 | s3 | o1 | h2 | o2 | h3 | mu,s(pad->OUT)]
# Bias slab columns:   [in | h1 | s2 | s3 | o1 | h2 | o2 | h3 | mu,s(pad->OUT)]
# ----------------------------------------------------------------------------
def _make_encode_kernel(H, OUT):
    def kernel(x_ref, w_in_ref, w_ref, b_ref, out_ref):
        def lin(a, c0, width, b0):
            return jnp.dot(a.astype(jnp.bfloat16), w_ref[:, c0:c0 + width],
                           preferred_element_type=jnp.float32) \
                   + b_ref[:, b0:b0 + width]

        x = x_ref[...]                                                 # (B, D)
        i = jnp.tanh(jnp.dot(x.astype(jnp.bfloat16), w_in_ref[...],
                             preferred_element_type=jnp.float32)
                     + b_ref[:, 0:H])
        h1 = jnp.tanh(lin(i, 0, H, H))
        f3 = jnp.tanh(lin(h1, H, 3 * H, 2 * H))          # [s2 | s3 | o1] fused
        s2 = f3[:, 0:H]
        s3 = f3[:, H:2 * H]
        o1 = f3[:, 2 * H:3 * H]
        h2 = jnp.tanh(lin(h1 + s2, 4 * H, H, 5 * H))
        o2 = jnp.tanh(lin(h2, 5 * H, H, 6 * H))
        o3 = jnp.tanh(lin(h2 + s3, 6 * H, H, 7 * H))
        out = o1 + o2 + o3
        # fused, lane-padded [fc_mu | fc_s] -> (B, OUT); wrapper slices mu/logstd
        out_ref[...] = lin(out, 7 * H, OUT, 8 * H)
    return kernel


# ----------------------------------------------------------------------------
# Module wrapper (params, codebook, pallas_call caches, top-k merge, gather)
# ----------------------------------------------------------------------------
class PriorNetworkPallas:
    def __init__(self, size_training_set, code_length, n_hidden=512, k=5,
                 random_seed=4543, training=True):
        self.rdn = np.random.RandomState(random_seed)
        self.k = k
        self.code_length = code_length
        self.n_hidden = n_hidden
        self.size_training_set = size_training_set
        self.training = training  # PyTorch nn.Module default

        N, D = size_training_set, code_length

        # ---- VMEM-budgeted tiling of the codebook stream -------------------
        vmem_cap = _vmem_capacity_bytes()
        self.vmem_limit = int(min(vmem_cap * 3 // 4, 96 * 1024 * 1024))
        budget = self.vmem_limit // 2           # headroom for scratch / spills
        b_ref = 64                              # batch assumed for sizing
        bytes_per_col = (2 * D * 2              # double-buffered bf16 tile
                         + 2 * 32               # double-buffered padded f32 c2
                         + 4 * b_ref * 4)       # f32 score/work intermediates
        n_tile_max = max(512, (budget // bytes_per_col) // 512 * 512)
        self.n_tile = int(min(n_tile_max, _round_up(max(N, 1), 512), 1 << 17))
        self.N_pad = _round_up(max(N, 1), self.n_tile)

        # ---- fixed (non-trainable) codebook, same init as PyTorch module ---
        codes_np = self.rdn.standard_normal((N, D)).astype(np.float32)
        # single stored copy: transposed bf16 (lane-dense N); padded cols zero
        codes_T = np.zeros((D, self.N_pad), dtype=np.float32)
        codes_T[:, :N] = codes_np.T
        self.codes_T_bf16 = jnp.asarray(codes_T, dtype=jnp.bfloat16)
        # precomputed squared norms (f32, accurate); padded cols never win
        c2_np = np.full((1, self.N_pad), 1e30, dtype=np.float32)
        c2_np[0, :N] = np.sum(codes_np * codes_np, axis=1)
        self.c2_row = jnp.asarray(c2_np)

        # ---- MLP parameters (PyTorch-style Linear init distribution) -------
        # TODO(synk): weights come from jax.random.PRNGKey(0), not the PyTorch
        # module's state_dict, so encode() is distributionally (not bitwise)
        # equivalent unless weights are loaded externally.
        H = _round_up(n_hidden, 128)
        OUT = _round_up(2 * D, 128)
        self.H, self.OUT = H, OUT

        dims = {
            "input_layer":  (D, n_hidden),
            "h1":           (n_hidden, n_hidden),
            "skipin_to_2":  (n_hidden, n_hidden),
            "skipin_to_3":  (n_hidden, n_hidden),
            "skip1_to_out": (n_hidden, n_hidden),
            "skip2_to_out": (n_hidden, n_hidden),
            "h2":           (n_hidden, n_hidden),
            "h3":           (n_hidden, n_hidden),
            "fc_mu":        (n_hidden, D),
            "fc_s":         (n_hidden, D),
        }
        key = jax.random.PRNGKey(0)
        params = {}
        for name, (fin, fout) in dims.items():
            key, kw, kb = jax.random.split(key, 3)
            bound = 1.0 / float(np.sqrt(fin))
            w = jax.random.uniform(kw, (fin, fout), jnp.float32, -bound, bound)
            b = jax.random.uniform(kb, (1, fout), jnp.float32, -bound, bound)
            params[name] = (w, b)

        def pad_to(a, rows, cols):
            out = jnp.zeros((rows, cols), jnp.float32)
            return out.at[:a.shape[0], :a.shape[1]].set(a)

        # lane-padded slabs; zero padding is exact (tanh(0) == 0)
        w_in, b_in = params["input_layer"]
        self.w_in_bf16 = pad_to(w_in, D, H).astype(jnp.bfloat16)

        slab_w, slab_b = [], [pad_to(b_in, 1, H)]
        for name in ["h1", "skipin_to_2", "skipin_to_3", "skip1_to_out",
                     "h2", "skip2_to_out", "h3"]:
            w, b = params[name]
            slab_w.append(pad_to(w, H, H))
            slab_b.append(pad_to(b, 1, H))
        w_mu, b_mu = params["fc_mu"]
        w_s, b_s = params["fc_s"]
        slab_w.append(pad_to(jnp.concatenate([w_mu, w_s], axis=1), H, OUT))
        slab_b.append(pad_to(jnp.concatenate([b_mu, b_s], axis=1), 1, OUT))
        self.w_slab_bf16 = jnp.concatenate(slab_w, axis=1).astype(jnp.bfloat16)
        self.b_slab = jnp.concatenate(slab_b, axis=1)        # f32 (1, 8H+OUT)

        # pallas_call / jit caches (built once per shape)
        self._knn_cache = {}
        self._encode_cache = {}

    # -- kNN search -----------------------------------------------------------
    def _build_knn_call(self, B_pad, k, kpad):
        D = self.code_length
        n_tile, N_pad = self.n_tile, self.N_pad
        num_tiles = N_pad // n_tile
        cost = pl.CostEstimate(
            flops=int(2 * B_pad * N_pad * D + (2 + 7 * k) * B_pad * N_pad),
            transcendentals=0,
            bytes_accessed=int(N_pad * D * 2 + N_pad * 4 + B_pad * D * 2
                               + B_pad * num_tiles * kpad * 8))
        return pl.pallas_call(
            _make_knn_topk_kernel(k, kpad, n_tile),
            out_shape=(
                jax.ShapeDtypeStruct((B_pad, num_tiles * kpad), jnp.float32),
                jax.ShapeDtypeStruct((B_pad, num_tiles * kpad), jnp.int32)),
            grid_spec=pltpu.PrefetchScalarGridSpec(
                num_scalar_prefetch=0,
                grid=(num_tiles,),
                in_specs=[
                    pl.BlockSpec((B_pad, D), lambda n: (0, 0)),     # resident q
                    pl.BlockSpec((D, n_tile), lambda n: (0, n)),    # codebook
                    pl.BlockSpec((1, n_tile), lambda n: (0, n)),    # ||c||^2
                ],
                out_specs=[
                    pl.BlockSpec((B_pad, kpad), lambda n: (0, n)),
                    pl.BlockSpec((B_pad, kpad), lambda n: (0, n)),
                ],
            ),
            compiler_params=pltpu.CompilerParams(
                dimension_semantics=("parallel",),
                vmem_limit_bytes=self.vmem_limit),
            cost_estimate=cost,
        )

    def _get_knn_fn(self, B, n_neighbors):
        key = (B, n_neighbors)
        if key in self._knn_cache:
            return self._knn_cache[key]
        D = self.code_length
        B_pad = _round_up(B, 16)                 # bf16 packs 16 rows / sublane
        kpad = _round_up(max(n_neighbors, 1), 128)
        call = self._build_knn_call(B_pad, n_neighbors, kpad)

        def fn(test, codes_T, c2_row):
            if B_pad != B:
                tq = jnp.zeros((B_pad, D), jnp.float32).at[:B].set(test)
            else:
                tq = test
            s_cand, i_cand = call(tq.astype(jnp.bfloat16), codes_T, c2_row)
            # merge per-tile candidates: k smallest scores == k nearest codes
            neg, pos = lax.top_k(-s_cand[:B], n_neighbors)
            idx = jnp.take_along_axis(i_cand[:B], pos, axis=1)
            # reconstruct true Euclidean distances for the selected k only
            t2 = jnp.sum(test * test, axis=1, keepdims=True)
            dists = jnp.sqrt(jnp.maximum(t2 - neg, 0.0))
            return dists, idx

        jfn = jax.jit(fn)
        self._knn_cache[key] = jfn
        return jfn

    def kneighbors(self, test, n_neighbors):
        # NOTE: if n_neighbors > size_training_set, padded (1e30-score)
        # codebook columns can be selected (same caveat as before).
        test = jnp.asarray(test, jnp.float32)
        B = test.shape[0]
        return self._get_knn_fn(B, int(n_neighbors))(
            test, self.codes_T_bf16, self.c2_row)

    def batch_pick_close_neighbor(self, codes):
        _, neighbor_indexes = self.kneighbors(codes, self.k)
        bsize = neighbor_indexes.shape[0]
        if self.training:
            # host-side numpy RNG, matching the PyTorch module's self.rdn
            chosen = jnp.asarray(self.rdn.randint(0, self.k, size=bsize),
                                 dtype=jnp.int32)
        else:
            chosen = jnp.zeros((bsize,), dtype=jnp.int32)
        picked = neighbor_indexes[jnp.arange(bsize), chosen]
        # gather columns of the single bf16 codebook copy, upcast for encode
        return jnp.take(self.codes_T_bf16, picked, axis=1).T.astype(jnp.float32)

    # -- prior MLP ------------------------------------------------------------
    def _get_encode_fn(self, B):
        if B in self._encode_cache:
            return self._encode_cache[B]
        H, OUT, D = self.H, self.OUT, self.code_length
        B_pad = _round_up(B, 8)
        cost = pl.CostEstimate(
            flops=int(2 * B_pad * (D * H + H * (7 * H + OUT)) + 10 * B_pad * H),
            transcendentals=int(8 * B_pad * H),
            bytes_accessed=int(2 * (D * H + H * (7 * H + OUT))
                               + 4 * (8 * H + OUT) + 4 * B_pad * (D + OUT)))
        call = pl.pallas_call(
            _make_encode_kernel(H, OUT),
            out_shape=jax.ShapeDtypeStruct((B_pad, OUT), jnp.float32),
            in_specs=[_vmem_spec()] * 4,
            out_specs=_vmem_spec(),
            compiler_params=pltpu.CompilerParams(
                vmem_limit_bytes=self.vmem_limit),
            cost_estimate=cost,
        )

        def fn(x, w_in, w_slab, b_slab):
            xp = x if B_pad == B else \
                jnp.zeros((B_pad, D), jnp.float32).at[:B].set(x)
            ms = call(xp, w_in, w_slab, b_slab)
            return ms[:B, :D], ms[:B, D:2 * D]

        jfn = jax.jit(fn)
        self._encode_cache[B] = jfn
        return jfn

    def encode(self, prev_code):
        prev_code = jnp.asarray(prev_code, jnp.float32)
        B = prev_code.shape[0]
        return self._get_encode_fn(B)(
            prev_code, self.w_in_bf16, self.w_slab_bf16, self.b_slab)

    def forward(self, codes):
        previous_codes = self.batch_pick_close_neighbor(codes)
        return self.encode(previous_codes)


if __name__ == "__main__":
    # small, module-consistent shapes
    batch = 8
    code_length = 16
    n_hidden = 64
    size_training_set = 256
    k = 5

    model = PriorNetworkPallas(size_training_set, code_length,
                               n_hidden=n_hidden, k=k)

    key = jax.random.PRNGKey(0)
    test_codes = jax.random.normal(key, (batch, code_length), dtype=jnp.float32)

    # exercise the kNN path standalone once (distances + indices)
    dists, idx = model.kneighbors(test_codes, k)
    jax.block_until_ready(dists)
    assert dists.shape == (batch, k) and idx.shape == (batch, k)
    assert bool(jnp.all(jnp.isfinite(dists)))
    assert bool(jnp.all((idx >= 0) & (idx < size_training_set)))

    mu, logstd = model.forward(test_codes)
    jax.block_until_ready(mu)
    jax.block_until_ready(logstd)

    assert mu.shape == (batch, code_length)
    assert logstd.shape == (batch, code_length)
    assert mu.dtype == jnp.float32 and logstd.dtype == jnp.float32
    assert bool(jnp.all(jnp.isfinite(mu))) and bool(jnp.all(jnp.isfinite(logstd)))
    print("KERNEL_OK")
</pallas_src>

<mosaic_0001>
module attributes {stable_mosaic.version = 11 : i64} {
  func.func @kernel(%arg0: i32, %arg1: memref<16x16xbf16, #tpu.memory_space<vmem>>, %arg2: memref<16x512xbf16, #tpu.memory_space<vmem>>, %arg3: memref<1x512xf32, #tpu.memory_space<vmem>>, %arg4: memref<16x128xf32, #tpu.memory_space<vmem>>, %arg5: memref<16x128xi32, #tpu.memory_space<vmem>>) attributes {dimension_semantics = [#tpu.dimension_semantics<parallel>], iteration_bounds = array<i64: 1>, scalar_prefetch = 0 : i64, scratch_operands = 0 : i64, tpu.core_type = #tpu.core_type<tc>, window_params = [{pipeline_mode = #tpu.pipeline_mode<synchronous>, transform_indices = @transform_0, window_bounds = array<i64: 16, 16>}, {transform_indices = @transform_1, window_bounds = array<i64: 16, 512>}, {transform_indices = @transform_2, window_bounds = array<i64: 1, 512>}, {transform_indices = @transform_3, window_bounds = array<i64: 16, 128>}, {transform_indices = @transform_4, window_bounds = array<i64: 16, 128>}]} {
    %c0 = arith.constant 0 : index
    %c0_0 = arith.constant 0 : index
    %0 = vector.load %arg1[%c0, %c0_0] : memref<16x16xbf16, #tpu.memory_space<vmem>>, vector<16x16xbf16>
    %c0_1 = arith.constant 0 : index
    %c0_2 = arith.constant 0 : index
    %1 = vector.load %arg2[%c0_1, %c0_2] : memref<16x512xbf16, #tpu.memory_space<vmem>>, vector<16x512xbf16>
    %cst = arith.constant dense<0.000000e+00> : vector<16x512xf32>
    %2 = tpu.matmul %0, %1, %cst {dimension_numbers = #tpu.dot_dimension_numbers<[1], [0], [0], [1], [0, 0, 1, 1], [], []>} : vector<16x16xbf16>, vector<16x512xbf16>, vector<16x512xf32> -> vector<16x512xf32>
    %c0_3 = arith.constant 0 : index
    %c0_4 = arith.constant 0 : index
    %3 = vector.load %arg3[%c0_3, %c0_4] : memref<1x512xf32, #tpu.memory_space<vmem>>, vector<1x512xf32>
    %cst_5 = arith.constant 2.000000e+00 : f32
    %4 = vector.broadcast %cst_5 : f32 to vector<16x512xf32>
    %5 = arith.mulf %4, %2 : vector<16x512xf32>
    %6 = vector.broadcast %3 : vector<1x512xf32> to vector<16x512xf32>
    %7 = arith.subf %6, %5 : vector<16x512xf32>
    %c512_i32 = arith.constant 512 : i32
    %8 = arith.muli %arg0, %c512_i32 : i32
    %9 = tpu.iota {dimensions = array<i32: 1>} : vector<16x512xi32>
    %10 = tpu.iota {dimensions = array<i32: 1>} : vector<16x128xi32>
    %cst_6 = arith.constant 3.000000e+38 : f32
    %11 = vector.broadcast %cst_6 : f32 to vector<16x128xf32>
    %c0_i32 = arith.constant 0 : i32
    %12 = vector.broadcast %c0_i32 : i32 to vector<16x128xi32>
    %cst_7 = arith.constant dense<0x7F800000> : vector<16xf32>
    %13 = vector.multi_reduction <minimumf>, %7, %cst_7 [1] : vector<16x512xf32> to vector<16xf32>
    %14 = vector.shape_cast %13 : vector<16xf32> to vector<16x1xf32>
    %15 = vector.broadcast %14 : vector<16x1xf32> to vector<16x512xf32>
    %16 = arith.cmpf oeq, %7, %15 : vector<16x512xf32>
    %c2147483647_i32 = arith.constant 2147483647 : i32
    %17 = vector.broadcast %c2147483647_i32 : i32 to vector<16x512xi32>
    %18 = arith.select %16, %9, %17 : vector<16x512xi1>, vector<16x512xi32>
    %cst_8 = arith.constant dense<2147483647> : vector<16xi32>
    %19 = vector.multi_reduction <minsi>, %18, %cst_8 [1] : vector<16x512xi32> to vector<16xi32>
    %20 = vector.shape_cast %19 : vector<16xi32> to vector<16x1xi32>
    %c0_i32_9 = arith.constant 0 : i32
    %21 = vector.broadcast %c0_i32_9 : i32 to vector<16x128xi32>
    %22 = arith.cmpi eq, %10, %21 : vector<16x128xi32>
    %23 = vector.shape_cast %14 : vector<16x1xf32> to vector<16x1xf32>
    %24 = vector.broadcast %23 : vector<16x1xf32> to vector<16x128xf32>
    %25 = arith.select %22, %24, %11 : vector<16x128xi1>, vector<16x128xf32>
    %c0_i32_10 = arith.constant 0 : i32
    %26 = vector.broadcast %c0_i32_10 : i32 to vector<16x128xi32>
    %27 = arith.cmpi eq, %10, %26 : vector<16x128xi32>
    %28 = vector.broadcast %8 : i32 to vector<16x1xi32>
    %29 = arith.addi %20, %28 : vector<16x1xi32>
    %30 = vector.shape_cast %29 : vector<16x1xi32> to vector<16x1xi32>
    %31 = vector.broadcast %30 : vector<16x1xi32> to vector<16x128xi32>
    %32 = arith.select %27, %31, %12 : vector<16x128xi1>, vector<16x128xi32>
    %33 = vector.broadcast %20 : vector<16x1xi32> to vector<16x512xi32>
    %34 = arith.cmpi eq, %9, %33 : vector<16x512xi32>
    %cst_11 = arith.constant 3.000000e+38 : f32
    %35 = vector.broadcast %cst_11 : f32 to vector<16x512xf32>
    %36 = arith.select %34, %35, %7 : vector<16x512xi1>, vector<16x512xf32>
    %cst_12 = arith.constant dense<0x7F800000> : vector<16xf32>
    %37 = vector.multi_reduction <minimumf>, %36, %cst_12 [1] : vector<16x512xf32> to vector<16xf32>
    %38 = vector.shape_cast %37 : vector<16xf32> to vector<16x1xf32>
    %39 = vector.broadcast %38 : vector<16x1xf32> to vector<16x512xf32>
    %40 = arith.cmpf oeq, %36, %39 : vector<16x512xf32>
    %c2147483647_i32_13 = arith.constant 2147483647 : i32
    %41 = vector.broadcast %c2147483647_i32_13 : i32 to vector<16x512xi32>
    %42 = arith.select %40, %9, %41 : vector<16x512xi1>, vector<16x512xi32>
    %cst_14 = arith.constant dense<2147483647> : vector<16xi32>
    %43 = vector.multi_reduction <minsi>, %42, %cst_14 [1] : vector<16x512xi32> to vector<16xi32>
    %44 = vector.shape_cast %43 : vector<16xi32> to vector<16x1xi32>
    %c1_i32 = arith.constant 1 : i32
    %45 = vector.broadcast %c1_i32 : i32 to vector<16x128xi32>
    %46 = arith.cmpi eq, %10, %45 : vector<16x128xi32>
    %47 = vector.shape_cast %38 : vector<16x1xf32> to vector<16x1xf32>
    %48 = vector.broadcast %47 : vector<16x1xf32> to vector<16x128xf32>
    %49 = arith.select %46, %48, %25 : vector<16x128xi1>, vector<16x128xf32>
    %c1_i32_15 = arith.constant 1 : i32
    %50 = vector.broadcast %c1_i32_15 : i32 to vector<16x128xi32>
    %51 = arith.cmpi eq, %10, %50 : vector<16x128xi32>
    %52 = vector.broadcast %8 : i32 to vector<16x1xi32>
    %53 = arith.addi %44, %52 : vector<16x1xi32>
    %54 = vector.shape_cast %53 : vector<16x1xi32> to vector<16x1xi32>
    %55 = vector.broadcast %54 : vector<16x1xi32> to vector<16x128xi32>
    %56 = arith.select %51, %55, %32 : vector<16x128xi1>, vector<16x128xi32>
    %57 = vector.broadcast %44 : vector<16x1xi32> to vector<16x512xi32>
    %58 = arith.cmpi eq, %9, %57 : vector<16x512xi32>
    %cst_16 = arith.constant 3.000000e+38 : f32
    %59 = vector.broadcast %cst_16 : f32 to vector<16x512xf32>
    %60 = arith.select %58, %59, %36 : vector<16x512xi1>, vector<16x512xf32>
    %cst_17 = arith.constant dense<0x7F800000> : vector<16xf32>
    %61 = vector.multi_reduction <minimumf>, %60, %cst_17 [1] : vector<16x512xf32> to vector<16xf32>
    %62 = vector.shape_cast %61 : vector<16xf32> to vector<16x1xf32>
    %63 = vector.broadcast %62 : vector<16x1xf32> to vector<16x512xf32>
    %64 = arith.cmpf oeq, %60, %63 : vector<16x512xf32>
    %c2147483647_i32_18 = arith.constant 2147483647 : i32
    %65 = vector.broadcast %c2147483647_i32_18 : i32 to vector<16x512xi32>
    %66 = arith.select %64, %9, %65 : vector<16x512xi1>, vector<16x512xi32>
    %cst_19 = arith.constant dense<2147483647> : vector<16xi32>
    %67 = vector.multi_reduction <minsi>, %66, %cst_19 [1] : vector<16x512xi32> to vector<16xi32>
    %68 = vector.shape_cast %67 : vector<16xi32> to vector<16x1xi32>
    %c2_i32 = arith.constant 2 : i32
    %69 = vector.broadcast %c2_i32 : i32 to vector<16x128xi32>
    %70 = arith.cmpi eq, %10, %69 : vector<16x128xi32>
    %71 = vector.shape_cast %62 : vector<16x1xf32> to vector<16x1xf32>
    %72 = vector.broadcast %71 : vector<16x1xf32> to vector<16x128xf32>
    %73 = arith.select %70, %72, %49 : vector<16x128xi1>, vector<16x128xf32>
    %c2_i32_20 = arith.constant 2 : i32
    %74 = vector.broadcast %c2_i32_20 : i32 to vector<16x128xi32>
    %75 = arith.cmpi eq, %10, %74 : vector<16x128xi32>
    %76 = vector.broadcast %8 : i32 to vector<16x1xi32>
    %77 = arith.addi %68, %76 : vector<16x1xi32>
    %78 = vector.shape_cast %77 : vector<16x1xi32> to vector<16x1xi32>
    %79 = vector.broadcast %78 : vector<16x1xi32> to vector<16x128xi32>
    %80 = arith.select %75, %79, %56 : vector<16x128xi1>, vector<16x128xi32>
    %81 = vector.broadcast %68 : vector<16x1xi32> to vector<16x512xi32>
    %82 = arith.cmpi eq, %9, %81 : vector<16x512xi32>
    %cst_21 = arith.constant 3.000000e+38 : f32
    %83 = vector.broadcast %cst_21 : f32 to vector<16x512xf32>
    %84 = arith.select %82, %83, %60 : vector<16x512xi1>, vector<16x512xf32>
    %cst_22 = arith.constant dense<0x7F800000> : vector<16xf32>
    %85 = vector.multi_reduction <minimumf>, %84, %cst_22 [1] : vector<16x512xf32> to vector<16xf32>
    %86 = vector.shape_cast %85 : vector<16xf32> to vector<16x1xf32>
    %87 = vector.broadcast %86 : vector<16x1xf32> to vector<16x512xf32>
    %88 = arith.cmpf oeq, %84, %87 : vector<16x512xf32>
    %c2147483647_i32_23 = arith.constant 2147483647 : i32
    %89 = vector.broadcast %c2147483647_i32_23 : i32 to vector<16x512xi32>
    %90 = arith.select %88, %9, %89 : vector<16x512xi1>, vector<16x512xi32>
    %cst_24 = arith.constant dense<2147483647> : vector<16xi32>
    %91 = vector.multi_reduction <minsi>, %90, %cst_24 [1] : vector<16x512xi32> to vector<16xi32>
    %92 = vector.shape_cast %91 : vector<16xi32> to vector<16x1xi32>
    %c3_i32 = arith.constant 3 : i32
    %93 = vector.broadcast %c3_i32 : i32 to vector<16x128xi32>
    %94 = arith.cmpi eq, %10, %93 : vector<16x128xi32>
    %95 = vector.shape_cast %86 : vector<16x1xf32> to vector<16x1xf32>
    %96 = vector.broadcast %95 : vector<16x1xf32> to vector<16x128xf32>
    %97 = arith.select %94, %96, %73 : vector<16x128xi1>, vector<16x128xf32>
    %c3_i32_25 = arith.constant 3 : i32
    %98 = vector.broadcast %c3_i32_25 : i32 to vector<16x128xi32>
    %99 = arith.cmpi eq, %10, %98 : vector<16x128xi32>
    %100 = vector.broadcast %8 : i32 to vector<16x1xi32>
    %101 = arith.addi %92, %100 : vector<16x1xi32>
    %102 = vector.shape_cast %101 : vector<16x1xi32> to vector<16x1xi32>
    %103 = vector.broadcast %102 : vector<16x1xi32> to vector<16x128xi32>
    %104 = arith.select %99, %103, %80 : vector<16x128xi1>, vector<16x128xi32>
    %105 = vector.broadcast %92 : vector<16x1xi32> to vector<16x512xi32>
    %106 = arith.cmpi eq, %9, %105 : vector<16x512xi32>
    %cst_26 = arith.constant 3.000000e+38 : f32
    %107 = vector.broadcast %cst_26 : f32 to vector<16x512xf32>
    %108 = arith.select %106, %107, %84 : vector<16x512xi1>, vector<16x512xf32>
    %cst_27 = arith.constant dense<0x7F800000> : vector<16xf32>
    %109 = vector.multi_reduction <minimumf>, %108, %cst_27 [1] : vector<16x512xf32> to vector<16xf32>
    %110 = vector.shape_cast %109 : vector<16xf32> to vector<16x1xf32>
    %111 = vector.broadcast %110 : vector<16x1xf32> to vector<16x512xf32>
    %112 = arith.cmpf oeq, %108, %111 : vector<16x512xf32>
    %c2147483647_i32_28 = arith.constant 2147483647 : i32
    %113 = vector.broadcast %c2147483647_i32_28 : i32 to vector<16x512xi32>
    %114 = arith.select %112, %9, %113 : vector<16x512xi1>, vector<16x512xi32>
    %cst_29 = arith.constant dense<2147483647> : vector<16xi32>
    %115 = vector.multi_reduction <minsi>, %114, %cst_29 [1] : vector<16x512xi32> to vector<16xi32>
    %116 = vector.shape_cast %115 : vector<16xi32> to vector<16x1xi32>
    %c4_i32 = arith.constant 4 : i32
    %117 = vector.broadcast %c4_i32 : i32 to vector<16x128xi32>
    %118 = arith.cmpi eq, %10, %117 : vector<16x128xi32>
    %119 = vector.shape_cast %110 : vector<16x1xf32> to vector<16x1xf32>
    %120 = vector.broadcast %119 : vector<16x1xf32> to vector<16x128xf32>
    %121 = arith.select %118, %120, %97 : vector<16x128xi1>, vector<16x128xf32>
    %c4_i32_30 = arith.constant 4 : i32
    %122 = vector.broadcast %c4_i32_30 : i32 to vector<16x128xi32>
    %123 = arith.cmpi eq, %10, %122 : vector<16x128xi32>
    %124 = vector.broadcast %8 : i32 to vector<16x1xi32>
    %125 = arith.addi %116, %124 : vector<16x1xi32>
    %126 = vector.shape_cast %125 : vector<16x1xi32> to vector<16x1xi32>
    %127 = vector.broadcast %126 : vector<16x1xi32> to vector<16x128xi32>
    %128 = arith.select %123, %127, %104 : vector<16x128xi1>, vector<16x128xi32>
    %c0_31 = arith.constant 0 : index
    %c0_32 = arith.constant 0 : index
    %129 = vector.load %arg4[%c0_31, %c0_32] : memref<16x128xf32, #tpu.memory_space<vmem>>, vector<16x128xf32>
    tpu.vector_store %arg4[%c0_31, %c0_32], %121 {strides = array<i32>} : memref<16x128xf32, #tpu.memory_space<vmem>>, vector<16x128xf32>,
    %c0_33 = arith.constant 0 : index
    %c0_34 = arith.constant 0 : index
    %130 = vector.load %arg5[%c0_33, %c0_34] : memref<16x128xi32, #tpu.memory_space<vmem>>, vector<16x128xi32>
    tpu.vector_store %arg5[%c0_33, %c0_34], %128 {strides = array<i32>} : memref<16x128xi32, #tpu.memory_space<vmem>>, vector<16x128xi32>,
    return
  }
  func.func @transform_0(%arg0: i32) -> (i32, i32) {
    %c0_i32 = arith.constant 0 : i32
    %c0_i32_0 = arith.constant 0 : i32
    %c0_i32_1 = arith.constant 0 : i32
    return %c0_i32, %c0_i32_0 : i32, i32
  }
  func.func @transform_1(%arg0: i32) -> (i32, i32) {
    %c0_i32 = arith.constant 0 : i32
    %c0_i32_0 = arith.constant 0 : i32
    return %c0_i32, %arg0 : i32, i32
  }
  func.func @transform_2(%arg0: i32) -> (i32, i32) {
    %c0_i32 = arith.constant 0 : i32
    %c0_i32_0 = arith.constant 0 : i32
    return %c0_i32, %arg0 : i32, i32
  }
  func.func @transform_3(%arg0: i32) -> (i32, i32) {
    %c0_i32 = arith.constant 0 : i32
    %c0_i32_0 = arith.constant 0 : i32
    return %c0_i32, %arg0 : i32, i32
  }
  func.func @transform_4(%arg0: i32) -> (i32, i32) {
    %c0_i32 = arith.constant 0 : i32
    %c0_i32_0 = arith.constant 0 : i32
    return %c0_i32, %arg0 : i32, i32
  }
}

</mosaic_0001>

<llo_original>
// kernel: fn.1
$region0: #{fn.1}
  #allocation0 [shape = 'u32[]', space=smem, size = 0x4, offset = 0x4, fixed_abs, tag = 'smem constant byte address 0x4 - core index']
  #allocation1 [shape = 'u32[144,128]{1,0:T(1,128)}', space=vmem, size = 0x12000, scoped, tag = 'internal scratch']
  %s0 = inlined_call_operand.vmem [shape: bf16[16,16], index: 0, kind: input, shape index: {}]
  %s1 = inlined_call_operand.hbm [shape: bf16[16,512], index: 1, kind: input, shape index: {}]
  %s2 = inlined_call_operand.vmem [shape: f32[1,512], index: 2, kind: input, shape index: {}]
  %s3 = inlined_call_operand.vmem [shape: f32[16,128], index: 3, kind: output, shape index: {0}]
  %s4 = inlined_call_operand.vmem [shape: s32[16,128], index: 4, kind: output, shape index: {1}]
  %5 = xla_tuple %s3, %s4
  %s6 = sld [smem:[#allocation0]]
  $region34: #{fn.1} parent=0
    _
  %s8 = ssub.s32 1, %s6
  %s9 = scalar_select 0, %s8, %s6
  $region1: #{fn.1} parent=0
    #allocation2 [shape = 'u8[16384]{0}', space=vmem, size = 0x4000, scoped, tag = 'input window, operand 1, single buffered']
    #allocation3 [shape = 's32[1]{0}', space=sflag, size = 0x4, scoped, tag = 'scoped memory for fn.1']
    %10 = vsyncpa [#allocation3], 0
    // Predicated region
    $region2: #{fn.1} parent=1 // pred_check
      _
    $region3: #{fn.1} parent=1 // pred_check_branch
      %12 = sbr.rel (0) target = $region5
    $region4: #{fn.1} parent=1 // pred_region
      _
    $region5: #{fn.1} parent=1 // pred_fallthru
      _
    // Predicated region
    $region6: #{fn.1} parent=1 // pred_check
      _
    $region7: #{fn.1} parent=1 // pred_check_branch
      %14 = sbr.rel (0) target = $region9
    $region8: #{fn.1} parent=1 // pred_region
      %s16 = ssub.s32 512, 512
      %17 = vsyncadd [#allocation3], %s16
      %s18 = sshll.u32 [#allocation2], 4
      %s19 = int_to_ptr.vmem [resolvable:$true] %s18
      %24 = dma.hbm_to_vmem [thread:$0]  %s1, 512, %s19, [#allocation3], 256, 256, 16
    $region9: #{fn.1} parent=1 // pred_fallthru
      _
    // Predicated region
    $region10: #{fn.1} parent=1 // pred_check
      _
    $region11: #{fn.1} parent=1 // pred_check_branch
      %26 = sbr.rel (0) target = $region13
    $region12: #{fn.1} parent=1 // pred_region
      _
    $region13: #{fn.1} parent=1 // pred_fallthru
      _
    // Predicated region
    $region14: #{fn.1} parent=1 // pred_check
      _
    $region15: #{fn.1} parent=1 // pred_check_branch
      %28 = sbr.rel (0) target = $region17
    $region16: #{fn.1} parent=1 // pred_region
      %29 = dma.done [#allocation3], 512
    $region17: #{fn.1} parent=1 // pred_fallthru
      _
    %v31 = vld [vmem:[%s0] sm:$0xf]
    %v32 = vld [vmem:[%s0 + $0x4] sm:$0xf]
    %v33 = vld [vmem:[#allocation2] sm:$0xff]
    %v34 = vld [vmem:[#allocation2 + $0x8] sm:$0xff]
    %v35 = vld [vmem:[#allocation2 + $0x10] sm:$0xff]
    %v36 = vld [vmem:[#allocation2 + $0x18] sm:$0xff]
    %v39 = vunpack.c.l.b16 %v31
    %v40 = vunpack.c.l.b16 %v32
    %v41 = vpack.c.b16 %v40, %v39
    %v46 = vunpack.c.l.b16 %v33
    %v47 = vunpack.c.h.b16 %v33
    %v48 = vunpack.c.l.b16 %v34
    %v49 = vunpack.c.h.b16 %v34
    %v50 = vunpack.c.l.b16 %v35
    %v51 = vunpack.c.h.b16 %v35
    %v52 = vunpack.c.l.b16 %v36
    %v53 = vunpack.c.h.b16 %v36
    %v54 = vpack.c.b16 %v50, %v46
    %v55 = vpack.c.b16 %v51, %v47
    %v56 = vpack.c.b16 %v52, %v48
    %v57 = vpack.c.b16 %v53, %v49
    %vm62 = vcmask 130048
    %v64 = vsel %vm62, %v41, 0
    %66 = vmatprep.subr.bf16.mxu0 0
    %67 = vmatpush1.bf16.msra.mxu0 0
    %68 = vmatprep.subr.bf16.mxu0 0
    %69 = vmatpush1.bf16.msra.mxu0 0
    %70 = vmatprep.subr.bf16.mxu0 0
    %71 = vmatpush1.bf16.msra.mxu0 0
    %72 = vmatprep.subr.bf16.mxu0 0
    %73 = vmatpush1.bf16.msra.mxu0 0
    %74 = vmatprep.subr.bf16.mxu0 0
    %75 = vmatpush1.bf16.msra.mxu0 0
    %76 = vmatprep.subr.bf16.mxu0 0
    %77 = vmatpush1.bf16.msra.mxu0 0
    %78 = vmatprep.subr.bf16.mxu0 0
    %79 = vmatpush1.bf16.msra.mxu0 0
    %80 = vmatprep.subr.bf16.mxu0 %v55
    %81 = vmatpush1.bf16.msra.mxu0 %v54
    %82 = vmatprep.subr.bf16.mxu0 0
    %83 = vmatpush2.bf16.msra.mxu0 0
    %84 = vmatprep.subr.bf16.mxu0 0
    %85 = vmatpush2.bf16.msra.mxu0 0
    %86 = vmatprep.subr.bf16.mxu0 0
    %87 = vmatpush2.bf16.msra.mxu0 0
    %88 = vmatprep.subr.bf16.mxu0 0
    %89 = vmatpush2.bf16.msra.mxu0 0
    %90 = vmatprep.subr.bf16.mxu0 0
    %91 = vmatpush2.bf16.msra.mxu0 0
    %92 = vmatprep.subr.bf16.mxu0 0
    %93 = vmatpush2.bf16.msra.mxu0 0
    %94 = vmatprep.subr.bf16.mxu0 0
    %95 = vmatpush2.bf16.msra.mxu0 0
    %96 = vmatprep.subr.bf16.mxu0 0
    %97 = vmatpush2.bf16.msra.mxu0 0
    %98 = vmatprep.mubr.bf16.mxu0 0
    %99 = vmatmul.mubr.bf16.gmra.mxu0 %v64
    %v100 = vpop.f32.mrf.mxu0
    %v101 = vadd.f32 0.0, %v100
    %v102 = vpop.f32.mrf.mxu0
    %v103 = vadd.f32 0.0, %v102
    %v104 = vpop.f32.mrf.mxu0
    %v105 = vadd.f32 0.0, %v104
    %v106 = vpop.f32.mrf.mxu0
    %v107 = vadd.f32 0.0, %v106
    %108 = vdwg.mxu0
    %109 = vmatprep.subr.bf16.mxu0 0
    %110 = vmatpush1.bf16.msra.mxu0 0
    %111 = vmatprep.subr.bf16.mxu0 0
    %112 = vmatpush1.bf16.msra.mxu0 0
    %113 = vmatprep.subr.bf16.mxu0 0
    %114 = vmatpush1.bf16.msra.mxu0 0
    %115 = vmatprep.subr.bf16.mxu0 0
    %116 = vmatpush1.bf16.msra.mxu0 0
    %117 = vmatprep.subr.bf16.mxu0 0
    %118 = vmatpush1.bf16.msra.mxu0 0
    %119 = vmatprep.subr.bf16.mxu0 0
    %120 = vmatpush1.bf16.msra.mxu0 0
    %121 = vmatprep.subr.bf16.mxu0 0
    %122 = vmatpush1.bf16.msra.mxu0 0
    %123 = vmatprep.subr.bf16.mxu0 %v57
    %124 = vmatpush1.bf16.msra.mxu0 %v56
    %125 = vmatprep.subr.bf16.mxu0 0
    %126 = vmatpush2.bf16.msra.mxu0 0
    %127 = vmatprep.subr.bf16.mxu0 0
    %128 = vmatpush2.bf16.msra.mxu0 0
    %129 = vmatprep.subr.bf16.mxu0 0
    %130 = vmatpush2.bf16.msra.mxu0 0
    %131 = vmatprep.subr.bf16.mxu0 0
    %132 = vmatpush2.bf16.msra.mxu0 0
    %133 = vmatprep.subr.bf16.mxu0 0
    %134 = vmatpush2.bf16.msra.mxu0 0
    %135 = vmatprep.subr.bf16.mxu0 0
    %136 = vmatpush2.bf16.msra.mxu0 0
    %137 = vmatprep.subr.bf16.mxu0 0
    %138 = vmatpush2.bf16.msra.mxu0 0
    %139 = vmatprep.subr.bf16.mxu0 0
    %140 = vmatpush2.bf16.msra.mxu0 0
    %141 = vmatprep.mubr.bf16.mxu0 0
    %142 = vmatmul.mubr.bf16.gmra.mxu0 %v64
    %v143 = vpop.f32.mrf.mxu0
    %v144 = vadd.f32 0.0, %v143
    %v145 = vpop.f32.mrf.mxu0
    %v146 = vadd.f32 0.0, %v145
    %v147 = vpop.f32.mrf.mxu0
    %v148 = vadd.f32 0.0, %v147
    %v149 = vpop.f32.mrf.mxu0
    %v150 = vadd.f32 0.0, %v149
    %151 = vdwg.mxu0
    %v152 = vld [vmem:[%s2] sm:$0xf]
    %v153 = vmul.f32 %v101, 2.0
    %v154 = vmul.f32 %v103, 2.0
    %v155 = vmul.f32 %v144, 2.0
    %v156 = vmul.f32 %v146, 2.0
    %v157 = vmul.f32 %v105, 2.0
    %v158 = vmul.f32 %v107, 2.0
    %v159 = vmul.f32 %v148, 2.0
    %v160 = vmul.f32 %v150, 2.0
    %v162 = vlaneseq
    %v163 = vshrl.u32 %v162, 7
    %v164 = vsub.s32 0, %v163
    %v165 = vrot.slane %v152, %v164
    %v166 = vlaneseq
    %v167 = vshrl.u32 %v166, 7
    %v168 = vsub.s32 1, %v167
    %v169 = vrot.slane %v152, %v168
    %v170 = vlaneseq
    %v171 = vshrl.u32 %v170, 7
    %v172 = vsub.s32 2, %v171
    %v173 = vrot.slane %v152, %v172
    %v174 = vlaneseq
    %v175 = vshrl.u32 %v174, 7
    %v176 = vsub.s32 3, %v175
    %v177 = vrot.slane %v152, %v176
    %v182 = vsub.f32 %v165, %v153
    %v183 = vsub.f32 %v169, %v154
    %v184 = vsub.f32 %v173, %v155
    %v185 = vsub.f32 %v177, %v156
    %v186 = vsub.f32 %v165, %v157
    %v187 = vsub.f32 %v169, %v158
    %v188 = vsub.f32 %v173, %v159
    %v189 = vsub.f32 %v177, %v160
    %s190 = smul.u32 0, 512
    %v191 = vlaneseq
    %v192 = vand.u32 %v191, 127
    %v193 = vadd.s32 %v192, 128
    %v194 = vadd.s32 %v192, 256
    %v195 = vadd.s32 %v192, 384
    %v196 = vmin.f32 %v182, %v184
    %v197 = vmin.f32 %v183, %v185
    %v198 = vmin.f32 %v196, %v197
    %199 = vmin.xlane.f32.xlu0 %v198
    %v200 = vpop.xlane.xlu0 %199
    %v201 = vmin.f32 %v186, %v188
    %v202 = vmin.f32 %v187, %v189
    %v203 = vmin.f32 %v201, %v202
    %204 = vmin.xlane.f32.xlu0 %v203
    %v205 = vpop.xlane.xlu0 %204
    %vm206 = vcmp.eq.f32.partialorder %v182, %v200
    %vm207 = vcmp.eq.f32.partialorder %v183, %v200
    %vm208 = vcmp.eq.f32.partialorder %v184, %v200
    %vm209 = vcmp.eq.f32.partialorder %v185, %v200
    %vm210 = vcmp.eq.f32.partialorder %v186, %v205
    %vm211 = vcmp.eq.f32.partialorder %v187, %v205
    %vm212 = vcmp.eq.f32.partialorder %v188, %v205
    %vm213 = vcmp.eq.f32.partialorder %v189, %v205
    %v214 = vsel %vm206, %v192, 2147483647
    %v215 = vsel %vm207, %v193, 2147483647
    %v216 = vsel %vm208, %v194, 2147483647
    %v217 = vsel %vm209, %v195, 2147483647
    %v218 = vsel %vm210, %v192, 2147483647
    %v219 = vsel %vm211, %v193, 2147483647
    %v220 = vsel %vm212, %v194, 2147483647
    %v221 = vsel %vm213, %v195, 2147483647
    %vm222 = vcmp.lt.s32.totalorder %v214, %v216
    %v223 = vsel %vm222, %v214, %v216
    %vm224 = vcmp.lt.s32.totalorder %v215, %v217
    %v225 = vsel %vm224, %v215, %v217
    %vm226 = vcmp.lt.s32.totalorder %v223, %v225
    %v227 = vsel %vm226, %v223, %v225
    %v228 = vand.u32 %v227, 65535
    %v229 = vshra.s32 %v227, 16
    %v230 = vcvt.s32.f32 %v228
    %v231 = vcvt.s32.f32 %v229
    %232 = vmin.xlane.f32.xlu0 %v231
    %v233 = vpop.xlane.xlu0 %232
    %vm234 = vcmp.eq.f32.partialorder %v231, %v233
    %v235 = vsel %vm234, %v230, inf
    %236 = vmin.xlane.f32.xlu0 %v235
    %v237 = vpop.xlane.xlu0 %236
    %v238 = vcvt.f32.s32 %v237
    %v239 = vcvt.f32.s32 %v233
    %v240 = vshll.u32 %v239, 16
    %v241 = vadd.s32 %v240, %v238
    %vm242 = vcmp.lt.s32.totalorder %v218, %v220
    %v243 = vsel %vm242, %v218, %v220
    %vm244 = vcmp.lt.s32.totalorder %v219, %v221
    %v245 = vsel %vm244, %v219, %v221
    %vm246 = vcmp.lt.s32.totalorder %v243, %v245
    %v247 = vsel %vm246, %v243, %v245
    %v248 = vand.u32 %v247, 65535
    %v249 = vshra.s32 %v247, 16
    %v250 = vcvt.s32.f32 %v248
    %v251 = vcvt.s32.f32 %v249
    %252 = vmin.xlane.f32.xlu0 %v251
    %v253 = vpop.xlane.xlu0 %252
    %vm254 = vcmp.eq.f32.partialorder %v251, %v253
    %v255 = vsel %vm254, %v250, inf
    %256 = vmin.xlane.f32.xlu0 %v255
    %v257 = vpop.xlane.xlu0 %256
    %v258 = vcvt.f32.s32 %v257
    %v259 = vcvt.f32.s32 %v253
    %v260 = vshll.u32 %v259, 16
    %v261 = vadd.s32 %v260, %v258
    %vm262 = vcmp.eq.s32.totalorder %v192, 0
    %v263 = vsel %vm262, %v200, 3e+38
    %v264 = vsel %vm262, %v205, 3e+38
    %v265 = vstv %s190
    %v266 = vadd.s32 %v241, %v265
    %v267 = vadd.s32 %v261, %v265
    %v268 = vsel %vm262, %v266, 0
    %v269 = vsel %vm262, %v267, 0
    %vm270 = vcmp.eq.s32.totalorder %v192, %v241
    %vm271 = vcmp.eq.s32.totalorder %v193, %v241
    %vm272 = vcmp.eq.s32.totalorder %v194, %v241
    %vm273 = vcmp.eq.s32.totalorder %v195, %v241
    %vm274 = vcmp.eq.s32.totalorder %v192, %v261
    %vm275 = vcmp.eq.s32.totalorder %v193, %v261
    %vm276 = vcmp.eq.s32.totalorder %v194, %v261
    %vm277 = vcmp.eq.s32.totalorder %v195, %v261
    %v278 = vsel %vm270, 3e+38, %v182
    %v279 = vsel %vm271, 3e+38, %v183
    %v280 = vsel %vm272, 3e+38, %v184
    %v281 = vsel %vm273, 3e+38, %v185
    %v282 = vsel %vm274, 3e+38, %v186
    %v283 = vsel %vm275, 3e+38, %v187
    %v284 = vsel %vm276, 3e+38, %v188
    %v285 = vsel %vm277, 3e+38, %v189
    %v286 = vmin.f32 %v278, %v280
    %v287 = vmin.f32 %v279, %v281
    %v288 = vmin.f32 %v286, %v287
    %289 = vmin.xlane.f32.xlu0 %v288
    %v290 = vpop.xlane.xlu0 %289
    %v291 = vmin.f32 %v282, %v284
    %v292 = vmin.f32 %v283, %v285
    %v293 = vmin.f32 %v291, %v292
    %294 = vmin.xlane.f32.xlu0 %v293
    %v295 = vpop.xlane.xlu0 %294
    %vm296 = vcmp.eq.f32.partialorder %v278, %v290
    %vm297 = vcmp.eq.f32.partialorder %v279, %v290
    %vm298 = vcmp.eq.f32.partialorder %v280, %v290
    %vm299 = vcmp.eq.f32.partialorder %v281, %v290
    %vm300 = vcmp.eq.f32.partialorder %v282, %v295
    %vm301 = vcmp.eq.f32.partialorder %v283, %v295
    %vm302 = vcmp.eq.f32.partialorder %v284, %v295
    %vm303 = vcmp.eq.f32.partialorder %v285, %v295
    %v304 = vsel %vm296, %v192, 2147483647
    %v305 = vsel %vm297, %v193, 2147483647
    %v306 = vsel %vm298, %v194, 2147483647
    %v307 = vsel %vm299, %v195, 2147483647
    %v308 = vsel %vm300, %v192, 2147483647
    %v309 = vsel %vm301, %v193, 2147483647
    %v310 = vsel %vm302, %v194, 2147483647
    %v311 = vsel %vm303, %v195, 2147483647
    %vm312 = vcmp.lt.s32.totalorder %v304, %v306
    %v313 = vsel %vm312, %v304, %v306
    %vm314 = vcmp.lt.s32.totalorder %v305, %v307
    %v315 = vsel %vm314, %v305, %v307
    %vm316 = vcmp.lt.s32.totalorder %v313, %v315
    %v317 = vsel %vm316, %v313, %v315
    %v318 = vand.u32 %v317, 65535
    %v319 = vshra.s32 %v317, 16
    %v320 = vcvt.s32.f32 %v318
    %v321 = vcvt.s32.f32 %v319
    %322 = vmin.xlane.f32.xlu0 %v321
    %v323 = vpop.xlane.xlu0 %322
    %vm324 = vcmp.eq.f32.partialorder %v321, %v323
    %v325 = vsel %vm324, %v320, inf
    %326 = vmin.xlane.f32.xlu0 %v325
    %v327 = vpop.xlane.xlu0 %326
    %v328 = vcvt.f32.s32 %v327
    %v329 = vcvt.f32.s32 %v323
    %v330 = vshll.u32 %v329, 16
    %v331 = vadd.s32 %v330, %v328
    %vm332 = vcmp.lt.s32.totalorder %v308, %v310
    %v333 = vsel %vm332, %v308, %v310
    %vm334 = vcmp.lt.s32.totalorder %v309, %v311
    %v335 = vsel %vm334, %v309, %v311
    %vm336 = vcmp.lt.s32.totalorder %v333, %v335
    %v337 = vsel %vm336, %v333, %v335
    %v338 = vand.u32 %v337, 65535
    %v339 = vshra.s32 %v337, 16
    %v340 = vcvt.s32.f32 %v338
    %v341 = vcvt.s32.f32 %v339
    %342 = vmin.xlane.f32.xlu0 %v341
    %v343 = vpop.xlane.xlu0 %342
    %vm344 = vcmp.eq.f32.partialorder %v341, %v343
    %v345 = vsel %vm344, %v340, inf
    %346 = vmin.xlane.f32.xlu0 %v345
    %v347 = vpop.xlane.xlu0 %346
    %v348 = vcvt.f32.s32 %v347
    %v349 = vcvt.f32.s32 %v343
    %v350 = vshll.u32 %v349, 16
    %v351 = vadd.s32 %v350, %v348
    %vm352 = vcmp.eq.s32.totalorder %v192, 1
    %v353 = vsel %vm352, %v290, %v263
    %v354 = vsel %vm352, %v295, %v264
    %v355 = vadd.s32 %v331, %v265
    %v356 = vadd.s32 %v351, %v265
    %v357 = vsel %vm352, %v355, %v268
    %v358 = vsel %vm352, %v356, %v269
    %vm359 = vcmp.eq.s32.totalorder %v192, %v331
    %vm360 = vcmp.eq.s32.totalorder %v193, %v331
    %vm361 = vcmp.eq.s32.totalorder %v194, %v331
    %vm362 = vcmp.eq.s32.totalorder %v195, %v331
    %vm363 = vcmp.eq.s32.totalorder %v192, %v351
    %vm364 = vcmp.eq.s32.totalorder %v193, %v351
    %vm365 = vcmp.eq.s32.totalorder %v194, %v351
    %vm366 = vcmp.eq.s32.totalorder %v195, %v351
    %v367 = vsel %vm359, 3e+38, %v278
    %v368 = vsel %vm360, 3e+38, %v279
    %v369 = vsel %vm361, 3e+38, %v280
    %v370 = vsel %vm362, 3e+38, %v281
    %v371 = vsel %vm363, 3e+38, %v282
    %v372 = vsel %vm364, 3e+38, %v283
    %v373 = vsel %vm365, 3e+38, %v284
    %v374 = vsel %vm366, 3e+38, %v285
    %v375 = vmin.f32 %v367, %v369
    %v376 = vmin.f32 %v368, %v370
    %v377 = vmin.f32 %v375, %v376
    %378 = vmin.xlane.f32.xlu0 %v377
    %v379 = vpop.xlane.xlu0 %378
    %v380 = vmin.f32 %v371, %v373
    %v381 = vmin.f32 %v372, %v374
    %v382 = vmin.f32 %v380, %v381
    %383 = vmin.xlane.f32.xlu0 %v382
    %v384 = vpop.xlane.xlu0 %383
    %vm385 = vcmp.eq.f32.partialorder %v367, %v379
    %vm386 = vcmp.eq.f32.partialorder %v368, %v379
    %vm387 = vcmp.eq.f32.partialorder %v369, %v379
    %vm388 = vcmp.eq.f32.partialorder %v370, %v379
    %vm389 = vcmp.eq.f32.partialorder %v371, %v384
    %vm390 = vcmp.eq.f32.partialorder %v372, %v384
    %vm391 = vcmp.eq.f32.partialorder %v373, %v384
    %vm392 = vcmp.eq.f32.partialorder %v374, %v384
    %v393 = vsel %vm385, %v192, 2147483647
    %v394 = vsel %vm386, %v193, 2147483647
    %v395 = vsel %vm387, %v194, 2147483647
    %v396 = vsel %vm388, %v195, 2147483647
    %v397 = vsel %vm389, %v192, 2147483647
    %v398 = vsel %vm390, %v193, 2147483647
    %v399 = vsel %vm391, %v194, 2147483647
    %v400 = vsel %vm392, %v195, 2147483647
    %vm401 = vcmp.lt.s32.totalorder %v393, %v395
    %v402 = vsel %vm401, %v393, %v395
    %vm403 = vcmp.lt.s32.totalorder %v394, %v396
    %v404 = vsel %vm403, %v394, %v396
    %vm405 = vcmp.lt.s32.totalorder %v402, %v404
    %v406 = vsel %vm405, %v402, %v404
    %v407 = vand.u32 %v406, 65535
    %v408 = vshra.s32 %v406, 16
    %v409 = vcvt.s32.f32 %v407
    %v410 = vcvt.s32.f32 %v408
    %411 = vmin.xlane.f32.xlu0 %v410
    %v412 = vpop.xlane.xlu0 %411
    %vm413 = vcmp.eq.f32.partialorder %v410, %v412
    %v414 = vsel %vm413, %v409, inf
    %415 = vmin.xlane.f32.xlu0 %v414
    %v416 = vpop.xlane.xlu0 %415
    %v417 = vcvt.f32.s32 %v416
    %v418 = vcvt.f32.s32 %v412
    %v419 = vshll.u32 %v418, 16
    %v420 = vadd.s32 %v419, %v417
    %vm421 = vcmp.lt.s32.totalorder %v397, %v399
    %v422 = vsel %vm421, %v397, %v399
    %vm423 = vcmp.lt.s32.totalorder %v398, %v400
    %v424 = vsel %vm423, %v398, %v400
    %vm425 = vcmp.lt.s32.totalorder %v422, %v424
    %v426 = vsel %vm425, %v422, %v424
    %v427 = vand.u32 %v426, 65535
    %v428 = vshra.s32 %v426, 16
    %v429 = vcvt.s32.f32 %v427
    %v430 = vcvt.s32.f32 %v428
    %431 = vmin.xlane.f32.xlu0 %v430
    %v432 = vpop.xlane.xlu0 %431
    %vm433 = vcmp.eq.f32.partialorder %v430, %v432
    %v434 = vsel %vm433, %v429, inf
    %435 = vmin.xlane.f32.xlu0 %v434
    %v436 = vpop.xlane.xlu0 %435
    %v437 = vcvt.f32.s32 %v436
    %v438 = vcvt.f32.s32 %v432
    %v439 = vshll.u32 %v438, 16
    %v440 = vadd.s32 %v439, %v437
    %vm441 = vcmp.eq.s32.totalorder %v192, 2
    %v442 = vsel %vm441, %v379, %v353
    %v443 = vsel %vm441, %v384, %v354
    %v444 = vadd.s32 %v420, %v265
    %v445 = vadd.s32 %v440, %v265
    %v446 = vsel %vm441, %v444, %v357
    %v447 = vsel %vm441, %v445, %v358
    %vm448 = vcmp.eq.s32.totalorder %v192, %v420
    %vm449 = vcmp.eq.s32.totalorder %v193, %v420
    %vm450 = vcmp.eq.s32.totalorder %v194, %v420
    %vm451 = vcmp.eq.s32.totalorder %v195, %v420
    %vm452 = vcmp.eq.s32.totalorder %v192, %v440
    %vm453 = vcmp.eq.s32.totalorder %v193, %v440
    %vm454 = vcmp.eq.s32.totalorder %v194, %v440
    %vm455 = vcmp.eq.s32.totalorder %v195, %v440
    %v456 = vsel %vm448, 3e+38, %v367
    %v457 = vsel %vm449, 3e+38, %v368
    %v458 = vsel %vm450, 3e+38, %v369
    %v459 = vsel %vm451, 3e+38, %v370
    %v460 = vsel %vm452, 3e+38, %v371
    %v461 = vsel %vm453, 3e+38, %v372
    %v462 = vsel %vm454, 3e+38, %v373
    %v463 = vsel %vm455, 3e+38, %v374
    %v464 = vmin.f32 %v456, %v458
    %v465 = vmin.f32 %v457, %v459
    %v466 = vmin.f32 %v464, %v465
    %467 = vmin.xlane.f32.xlu0 %v466
    %v468 = vpop.xlane.xlu0 %467
    %v469 = vmin.f32 %v460, %v462
    %v470 = vmin.f32 %v461, %v463
    %v471 = vmin.f32 %v469, %v470
    %472 = vmin.xlane.f32.xlu0 %v471
    %v473 = vpop.xlane.xlu0 %472
    %vm474 = vcmp.eq.f32.partialorder %v456, %v468
    %vm475 = vcmp.eq.f32.partialorder %v457, %v468
    %vm476 = vcmp.eq.f32.partialorder %v458, %v468
    %vm477 = vcmp.eq.f32.partialorder %v459, %v468
    %vm478 = vcmp.eq.f32.partialorder %v460, %v473
    %vm479 = vcmp.eq.f32.partialorder %v461, %v473
    %vm480 = vcmp.eq.f32.partialorder %v462, %v473
    %vm481 = vcmp.eq.f32.partialorder %v463, %v473
    %v482 = vsel %vm474, %v192, 2147483647
    %v483 = vsel %vm475, %v193, 2147483647
    %v484 = vsel %vm476, %v194, 2147483647
    %v485 = vsel %vm477, %v195, 2147483647
    %v486 = vsel %vm478, %v192, 2147483647
    %v487 = vsel %vm479, %v193, 2147483647
    %v488 = vsel %vm480, %v194, 2147483647
    %v489 = vsel %vm481, %v195, 2147483647
    %vm490 = vcmp.lt.s32.totalorder %v482, %v484
    %v491 = vsel %vm490, %v482, %v484
    %vm492 = vcmp.lt.s32.totalorder %v483, %v485
    %v493 = vsel %vm492, %v483, %v485
    %vm494 = vcmp.lt.s32.totalorder %v491, %v493
    %v495 = vsel %vm494, %v491, %v493
    %v496 = vand.u32 %v495, 65535
    %v497 = vshra.s32 %v495, 16
    %v498 = vcvt.s32.f32 %v496
    %v499 = vcvt.s32.f32 %v497
    %500 = vmin.xlane.f32.xlu0 %v499
    %v501 = vpop.xlane.xlu0 %500
    %vm502 = vcmp.eq.f32.partialorder %v499, %v501
    %v503 = vsel %vm502, %v498, inf
    %504 = vmin.xlane.f32.xlu0 %v503
    %v505 = vpop.xlane.xlu0 %504
    %v506 = vcvt.f32.s32 %v505
    %v507 = vcvt.f32.s32 %v501
    %v508 = vshll.u32 %v507, 16
    %v509 = vadd.s32 %v508, %v506
    %vm510 = vcmp.lt.s32.totalorder %v486, %v488
    %v511 = vsel %vm510, %v486, %v488
    %vm512 = vcmp.lt.s32.totalorder %v487, %v489
    %v513 = vsel %vm512, %v487, %v489
    %vm514 = vcmp.lt.s32.totalorder %v511, %v513
    %v515 = vsel %vm514, %v511, %v513
    %v516 = vand.u32 %v515, 65535
    %v517 = vshra.s32 %v515, 16
    %v518 = vcvt.s32.f32 %v516
    %v519 = vcvt.s32.f32 %v517
    %520 = vmin.xlane.f32.xlu0 %v519
    %v521 = vpop.xlane.xlu0 %520
    %vm522 = vcmp.eq.f32.partialorder %v519, %v521
    %v523 = vsel %vm522, %v518, inf
    %524 = vmin.xlane.f32.xlu0 %v523
    %v525 = vpop.xlane.xlu0 %524
    %v526 = vcvt.f32.s32 %v525
    %v527 = vcvt.f32.s32 %v521
    %v528 = vshll.u32 %v527, 16
    %v529 = vadd.s32 %v528, %v526
    %vm530 = vcmp.eq.s32.totalorder %v192, 3
    %v531 = vsel %vm530, %v468, %v442
    %v532 = vsel %vm530, %v473, %v443
    %v533 = vadd.s32 %v509, %v265
    %v534 = vadd.s32 %v529, %v265
    %v535 = vsel %vm530, %v533, %v446
    %v536 = vsel %vm530, %v534, %v447
    %vm537 = vcmp.eq.s32.totalorder %v192, %v509
    %vm538 = vcmp.eq.s32.totalorder %v193, %v509
    %vm539 = vcmp.eq.s32.totalorder %v194, %v509
    %vm540 = vcmp.eq.s32.totalorder %v195, %v509
    %vm541 = vcmp.eq.s32.totalorder %v192, %v529
    %vm542 = vcmp.eq.s32.totalorder %v193, %v529
    %vm543 = vcmp.eq.s32.totalorder %v194, %v529
    %vm544 = vcmp.eq.s32.totalorder %v195, %v529
    %v545 = vsel %vm537, 3e+38, %v456
    %v546 = vsel %vm538, 3e+38, %v457
    %v547 = vsel %vm539, 3e+38, %v458
    %v548 = vsel %vm540, 3e+38, %v459
    %v549 = vsel %vm541, 3e+38, %v460
    %v550 = vsel %vm542, 3e+38, %v461
    %v551 = vsel %vm543, 3e+38, %v462
    %v552 = vsel %vm544, 3e+38, %v463
    %v553 = vmin.f32 %v545, %v547
    %v554 = vmin.f32 %v546, %v548
    %v555 = vmin.f32 %v553, %v554
    %556 = vmin.xlane.f32.xlu0 %v555
    %v557 = vpop.xlane.xlu0 %556
    %v558 = vmin.f32 %v549, %v551
    %v559 = vmin.f32 %v550, %v552
    %v560 = vmin.f32 %v558, %v559
    %561 = vmin.xlane.f32.xlu0 %v560
    %v562 = vpop.xlane.xlu0 %561
    %vm563 = vcmp.eq.f32.partialorder %v545, %v557
    %vm564 = vcmp.eq.f32.partialorder %v546, %v557
    %vm565 = vcmp.eq.f32.partialorder %v547, %v557
    %vm566 = vcmp.eq.f32.partialorder %v548, %v557
    %vm567 = vcmp.eq.f32.partialorder %v549, %v562
    %vm568 = vcmp.eq.f32.partialorder %v550, %v562
    %vm569 = vcmp.eq.f32.partialorder %v551, %v562
    %vm570 = vcmp.eq.f32.partialorder %v552, %v562
    %v571 = vsel %vm563, %v192, 2147483647
    %v572 = vsel %vm564, %v193, 2147483647
    %v573 = vsel %vm565, %v194, 2147483647
    %v574 = vsel %vm566, %v195, 2147483647
    %v575 = vsel %vm567, %v192, 2147483647
    %v576 = vsel %vm568, %v193, 2147483647
    %v577 = vsel %vm569, %v194, 2147483647
    %v578 = vsel %vm570, %v195, 2147483647
    %vm579 = vcmp.lt.s32.totalorder %v571, %v573
    %v580 = vsel %vm579, %v571, %v573
    %vm581 = vcmp.lt.s32.totalorder %v572, %v574
    %v582 = vsel %vm581, %v572, %v574
    %vm583 = vcmp.lt.s32.totalorder %v580, %v582
    %v584 = vsel %vm583, %v580, %v582
    %v585 = vand.u32 %v584, 65535
    %v586 = vshra.s32 %v584, 16
    %v587 = vcvt.s32.f32 %v585
    %v588 = vcvt.s32.f32 %v586
    %589 = vmin.xlane.f32.xlu0 %v588
    %v590 = vpop.xlane.xlu0 %589
    %vm591 = vcmp.eq.f32.partialorder %v588, %v590
    %v592 = vsel %vm591, %v587, inf
    %593 = vmin.xlane.f32.xlu0 %v592
    %v594 = vpop.xlane.xlu0 %593
    %v595 = vcvt.f32.s32 %v594
    %v596 = vcvt.f32.s32 %v590
    %v597 = vshll.u32 %v596, 16
    %v598 = vadd.s32 %v597, %v595
    %vm599 = vcmp.lt.s32.totalorder %v575, %v577
    %v600 = vsel %vm599, %v575, %v577
    %vm601 = vcmp.lt.s32.totalorder %v576, %v578
    %v602 = vsel %vm601, %v576, %v578
    %vm603 = vcmp.lt.s32.totalorder %v600, %v602
    %v604 = vsel %vm603, %v600, %v602
    %v605 = vand.u32 %v604, 65535
    %v606 = vshra.s32 %v604, 16
    %v607 = vcvt.s32.f32 %v605
    %v608 = vcvt.s32.f32 %v606
    %609 = vmin.xlane.f32.xlu0 %v608
    %v610 = vpop.xlane.xlu0 %609
    %vm611 = vcmp.eq.f32.partialorder %v608, %v610
    %v612 = vsel %vm611, %v607, inf
    %613 = vmin.xlane.f32.xlu0 %v612
    %v614 = vpop.xlane.xlu0 %613
    %v615 = vcvt.f32.s32 %v614
    %v616 = vcvt.f32.s32 %v610
    %v617 = vshll.u32 %v616, 16
    %v618 = vadd.s32 %v617, %v615
    %vm619 = vcmp.eq.s32.totalorder %v192, 4
    %v620 = vsel %vm619, %v557, %v531
    %v621 = vsel %vm619, %v562, %v532
    %v622 = vadd.s32 %v598, %v265
    %v623 = vadd.s32 %v618, %v265
    %v624 = vsel %vm619, %v622, %v535
    %v625 = vsel %vm619, %v623, %v536
    %626 = vst [vmem:[%s3] sm:$0xff] %v620
    %627 = vst [vmem:[%s3 + $0x8] sm:$0xff] %v621
    %628 = vst [vmem:[%s4] sm:$0xff] %v624
    %629 = vst [vmem:[%s4 + $0x8] sm:$0xff] %v625
    // Predicated region
    $region18: #{fn.1} parent=1 // pred_check
      _
    $region19: #{fn.1} parent=1 // pred_check_branch
      %631 = sbr.rel (0) target = $region21
    $region20: #{fn.1} parent=1 // pred_region
      _
    $region21: #{fn.1} parent=1 // pred_fallthru
      _
    // Predicated region
    $region22: #{fn.1} parent=1 // pred_check
      _
    $region23: #{fn.1} parent=1 // pred_check_branch
      %633 = sbr.rel (0) target = $region25
    $region24: #{fn.1} parent=1 // pred_region
      _
    $region25: #{fn.1} parent=1 // pred_fallthru
      _
    // Predicated region
    $region26: #{fn.1} parent=1 // pred_check
      _
    $region27: #{fn.1} parent=1 // pred_check_branch
      %635 = sbr.rel (0) target = $region29
    $region28: #{fn.1} parent=1 // pred_region
      _
    $region29: #{fn.1} parent=1 // pred_fallthru
      _
    // Predicated region
    $region30: #{fn.1} parent=1 // pred_check
      _
    $region31: #{fn.1} parent=1 // pred_check_branch
      %637 = sbr.rel (0) target = $region33
    $region32: #{fn.1} parent=1 // pred_region
      _
    $region33: #{fn.1} parent=1 // pred_fallthru
      _
    %638 = vsyncpa [#allocation3], 1

</llo_original>
